<compile_context>
chip_gen: v5e
topology: v5e:2x2
jax: 0.10.0
libtpu: 0.0.40
codegen_flags: <defaults>
</compile_context>

<pallas_src>
import functools

import jax
import jax.numpy as jnp
from jax import lax
from jax.experimental import pallas as pl
from jax.experimental.pallas import tpu as pltpu


def _same_lo(k):
    # PyTorch padding='same' (stride=1, dilation=1): top/left pad = (k-1)//2.
    return (k - 1) // 2


def _round_up(x, m):
    return ((x + m - 1) // m) * m


def _fuse_inception_weights(w_big, w_med, w_small):
    """Sum of three stride-1 'same' convs == one conv with the smaller kernels
    zero-embedded at offset lo_big - lo_small inside the big kernel."""
    kb = w_big.shape[-1]
    lo_b = _same_lo(kb)
    fused = w_big
    for w in (w_med, w_small):
        k = w.shape[-1]
        d = lo_b - _same_lo(k)
        fused = fused + jnp.pad(
            w, ((0, 0), (0, 0), (d, kb - k - d), (d, kb - k - d)))
    return fused


def _inception_conv_kernel(x_ref, w_ref, o_ref, p_ref, *,
                           NB, Cin8, k, Wp, Lin, Lout):
    # x_ref: (NB, Cin8, Lin)   padded slabs, row stride Wp, flat length Lin
    # w_ref: (CoutP, R)        fused weight, tap-major rows, R = k*k*Cin8
    # o_ref: (NB, CoutP, Lout) lane-dense packed output (row stride Wp)
    # p_ref: (R, NB*Lout)      im2col VMEM scratch
    for n in range(NB):
        for c0 in range(0, Cin8, 8):            # bound live vregs per 8-ch chunk
            xc = x_ref[n, c0:c0 + 8, :]         # (8, Lin) sublane-aligned load
            for i in range(k):
                for j in range(k):
                    s = i * Wp + j
                    xs = xc if s == 0 else pltpu.roll(xc, shift=Lin - s, axis=1)
                    r0 = (i * k + j) * Cin8 + c0
                    # full 8-sublane, lane-aligned (128-mult) unmasked store
                    p_ref[r0:r0 + 8, n * Lout:(n + 1) * Lout] = xs[:, :Lout]
    # One MXU matmul over the whole Cin8*k*k contraction dim, batch on lanes.
    out = jnp.dot(w_ref[...], p_ref[...], preferred_element_type=jnp.float32)
    for n in range(NB):
        o_ref[n] = out[:, n * Lout:(n + 1) * Lout].astype(o_ref.dtype)


def stnet_inception_block(x, w_big, w_med, w_small):
    """Forward of STNetInceptionBlock (bias=False):
       convBig(x) + convMedium(x) + convSmall(x), stride=1, padding='same'.
    x: (N, Cin, H, W); w_*: (Cout, Cin, k_i, k_i) with k_i = k, k-2, k-4."""
    # TODO(synk): bias=True variant would also add the summed (Cout,) bias;
    # the module default (and STNet's use) is bias=False.
    N, Cin, H, W = x.shape
    Cout = w_big.shape[0]
    k = w_big.shape[-1]
    dt = x.dtype

    w_fused = _fuse_inception_weights(w_big, w_med, w_small)   # (Cout,Cin,k,k)

    ph = _same_lo(k)
    pw = _same_lo(k)
    Hp = H + k - 1
    Wp = W + k - 1                     # packed row stride (no per-row 128 pad)
    Cin8 = _round_up(Cin, 8)           # sublane-aligned channel blocks (f32)
    CoutP = _round_up(Cout, 8)
    Lin = _round_up(Hp * Wp, 128)      # flat padded slab length (lane aligned)
    Lout = _round_up(H * Wp, 128)      # flat output length (lane dense)
    R = k * k * Cin8                   # im2col contraction dim

    # Batch chunking: >=2 grid steps when N>=2 (keeps both v7x cores busy),
    # while large N is still amortized inside each chunk's single matmul.
    n_chunks = 2 if N >= 2 else 1
    NB = pl.cdiv(N, n_chunks)
    N_pad = n_chunks * NB

    # Glue: batch/channel pad + 'same' spatial halo, flatten, pad flat to Lin.
    # (pad -> reshape -> pad fuses into one XLA scatter-into-zeros pass.)
    xp = jnp.pad(x, ((0, N_pad - N), (0, Cin8 - Cin),
                     (ph, Hp - H - ph), (pw, Wp - W - pw)))
    xf = jnp.pad(xp.reshape(N_pad, Cin8, Hp * Wp),
                 ((0, 0), (0, 0), (0, Lin - Hp * Wp)))

    # (CoutP, R), tap-major rows: row = (i*k + j)*Cin8 + c, zero for c >= Cin.
    w_eff = jnp.pad(w_fused, ((0, CoutP - Cout), (0, Cin8 - Cin),
                              (0, 0), (0, 0)))
    w_eff = jnp.transpose(w_eff, (0, 2, 3, 1)).reshape(CoutP, R).astype(dt)

    kernel = functools.partial(_inception_conv_kernel, NB=NB, Cin8=Cin8, k=k,
                               Wp=Wp, Lin=Lin, Lout=Lout)

    itemsize = jnp.dtype(dt).itemsize
    vmem_bytes = (R * NB * Lout * itemsize            # im2col scratch
                  + 2 * NB * Cin8 * Lin * itemsize    # double-buffered input
                  + 2 * CoutP * R * itemsize          # double-buffered weight
                  + 2 * NB * CoutP * Lout * itemsize) # double-buffered output
    vmem_limit = int(min(max(2 * vmem_bytes, 4 << 20), 64 << 20))

    cost = pl.CostEstimate(
        flops=int(2 * n_chunks * CoutP * R * NB * Lout),
        transcendentals=0,
        bytes_accessed=int((N_pad * Cin8 * Lin + CoutP * R
                            + N_pad * CoutP * Lout) * itemsize))

    out_p = pl.pallas_call(
        kernel,
        out_shape=jax.ShapeDtypeStruct((N_pad, CoutP, Lout), dt),
        grid_spec=pltpu.PrefetchScalarGridSpec(
            num_scalar_prefetch=0,
            grid=(n_chunks,),
            in_specs=[
                pl.BlockSpec((NB, Cin8, Lin), lambda g: (g, 0, 0)),
                pl.BlockSpec((CoutP, R), lambda g: (0, 0)),
            ],
            out_specs=pl.BlockSpec((NB, CoutP, Lout), lambda g: (g, 0, 0)),
            scratch_shapes=[pltpu.VMEM((R, NB * Lout), dt)],
        ),
        compiler_params=pltpu.CompilerParams(
            dimension_semantics=("parallel",),
            vmem_limit_bytes=vmem_limit),
        cost_estimate=cost,
    )(xf, w_eff)

    # Drop batch/channel padding, the flat tail, and the k-1 per-row halo cols.
    out = out_p[:N, :Cout, :H * Wp].reshape(N, Cout, H, Wp)[:, :, :, :W]
    return out


def _reference(x, w_big, w_med, w_small):
    """Direct sum of the three 'same' convolutions (validates the fusion too)."""
    out = None
    for w in (w_big, w_med, w_small):
        kk = w.shape[-1]
        lo = _same_lo(kk)
        pad = (lo, kk - 1 - lo)
        y = lax.conv_general_dilated(
            x, w, window_strides=(1, 1), padding=(pad, pad),
            dimension_numbers=("NCHW", "OIHW", "NCHW"),
            precision=lax.Precision.HIGHEST)
        out = y if out is None else out + y
    return out


if __name__ == "__main__":
    key = jax.random.PRNGKey(0)
    k1, k2, k3, k4 = jax.random.split(key, 4)

    # Small STNet-like config: kernel_size=5 -> conv kernels of size 5, 3, 1.
    N, Cin, Cout, H, W, ksz = 2, 4, 8, 16, 16, 5

    x = jax.random.normal(k1, (N, Cin, H, W), jnp.float32)
    w_big = 0.1 * jax.random.normal(k2, (Cout, Cin, ksz, ksz), jnp.float32)
    w_med = 0.1 * jax.random.normal(k3, (Cout, Cin, ksz - 2, ksz - 2), jnp.float32)
    w_small = 0.1 * jax.random.normal(k4, (Cout, Cin, ksz - 4, ksz - 4), jnp.float32)

    out = stnet_inception_block(x, w_big, w_med, w_small)
    out = jax.block_until_ready(out)

    ref = _reference(x, w_big, w_med, w_small)
    assert out.shape == (N, Cout, H, W), out.shape
    assert bool(jnp.isnan(out).sum() == 0)
    assert bool(jnp.allclose(out, ref, atol=1e-3, rtol=1e-3)), \
        float(jnp.abs(out - ref).max())
    print("KERNEL_OK")
</pallas_src>

<mosaic_0001>
module attributes {stable_mosaic.version = 11 : i64} {
  func.func @_inception_conv_kernel(%arg0: i32, %arg1: memref<1x8x512xf32, #tpu.memory_space<vmem>>, %arg2: memref<8x200xf32, #tpu.memory_space<vmem>>, %arg3: memref<1x8x384xf32, #tpu.memory_space<vmem>>, %arg4: memref<200x384xf32, #tpu.memory_space<vmem>>) attributes {dimension_semantics = [#tpu.dimension_semantics<parallel>], iteration_bounds = array<i64: 2>, scalar_prefetch = 0 : i64, scratch_operands = 1 : i64, tpu.core_type = #tpu.core_type<tc>, window_params = [{transform_indices = @transform_0, window_bounds = array<i64: 1, 8, 512>}, {pipeline_mode = #tpu.pipeline_mode<synchronous>, transform_indices = @transform_1, window_bounds = array<i64: 8, 200>}, {transform_indices = @transform_2, window_bounds = array<i64: 1, 8, 384>}]} {
    %c0 = arith.constant 0 : index
    %c0_0 = arith.constant 0 : index
    %c0_1 = arith.constant 0 : index
    %0 = vector.load %arg1[%c0, %c0_0, %c0_1] : memref<1x8x512xf32, #tpu.memory_space<vmem>>, vector<1x8x512xf32>
    %1 = vector.shape_cast %0 : vector<1x8x512xf32> to vector<8x512xf32>
    %2 = vector.extract_strided_slice %1 {offsets = [0, 0], sizes = [8, 384], strides = [1, 1]} : vector<8x512xf32> to vector<8x384xf32>
    %c0_2 = arith.constant 0 : index
    %c0_3 = arith.constant 0 : index
    %3 = vector.load %arg4[%c0_2, %c0_3] : memref<200x384xf32, #tpu.memory_space<vmem>>, vector<8x384xf32>
    tpu.vector_store %arg4[%c0_2, %c0_3], %2 {strides = array<i32>} : memref<200x384xf32, #tpu.memory_space<vmem>>, vector<8x384xf32>,
    %c511_i32 = arith.constant 511 : i32
    %4 = tpu.dynamic_rotate %1 by %c511_i32 dim 1 : vector<8x512xf32>, i32 -> vector<8x512xf32>
    %5 = vector.extract_strided_slice %4 {offsets = [0, 0], sizes = [8, 384], strides = [1, 1]} : vector<8x512xf32> to vector<8x384xf32>
    %c8 = arith.constant 8 : index
    %c0_4 = arith.constant 0 : index
    %6 = vector.load %arg4[%c8, %c0_4] : memref<200x384xf32, #tpu.memory_space<vmem>>, vector<8x384xf32>
    tpu.vector_store %arg4[%c8, %c0_4], %5 {strides = array<i32>} : memref<200x384xf32, #tpu.memory_space<vmem>>, vector<8x384xf32>,
    %c510_i32 = arith.constant 510 : i32
    %7 = tpu.dynamic_rotate %1 by %c510_i32 dim 1 : vector<8x512xf32>, i32 -> vector<8x512xf32>
    %8 = vector.extract_strided_slice %7 {offsets = [0, 0], sizes = [8, 384], strides = [1, 1]} : vector<8x512xf32> to vector<8x384xf32>
    %c16 = arith.constant 16 : index
    %c0_5 = arith.constant 0 : index
    %9 = vector.load %arg4[%c16, %c0_5] : memref<200x384xf32, #tpu.memory_space<vmem>>, vector<8x384xf32>
    tpu.vector_store %arg4[%c16, %c0_5], %8 {strides = array<i32>} : memref<200x384xf32, #tpu.memory_space<vmem>>, vector<8x384xf32>,
    %c509_i32 = arith.constant 509 : i32
    %10 = tpu.dynamic_rotate %1 by %c509_i32 dim 1 : vector<8x512xf32>, i32 -> vector<8x512xf32>
    %11 = vector.extract_strided_slice %10 {offsets = [0, 0], sizes = [8, 384], strides = [1, 1]} : vector<8x512xf32> to vector<8x384xf32>
    %c24 = arith.constant 24 : index
    %c0_6 = arith.constant 0 : index
    %12 = vector.load %arg4[%c24, %c0_6] : memref<200x384xf32, #tpu.memory_space<vmem>>, vector<8x384xf32>
    tpu.vector_store %arg4[%c24, %c0_6], %11 {strides = array<i32>} : memref<200x384xf32, #tpu.memory_space<vmem>>, vector<8x384xf32>,
    %c508_i32 = arith.constant 508 : i32
    %13 = tpu.dynamic_rotate %1 by %c508_i32 dim 1 : vector<8x512xf32>, i32 -> vector<8x512xf32>
    %14 = vector.extract_strided_slice %13 {offsets = [0, 0], sizes = [8, 384], strides = [1, 1]} : vector<8x512xf32> to vector<8x384xf32>
    %c32 = arith.constant 32 : index
    %c0_7 = arith.constant 0 : index
    %15 = vector.load %arg4[%c32, %c0_7] : memref<200x384xf32, #tpu.memory_space<vmem>>, vector<8x384xf32>
    tpu.vector_store %arg4[%c32, %c0_7], %14 {strides = array<i32>} : memref<200x384xf32, #tpu.memory_space<vmem>>, vector<8x384xf32>,
    %c492_i32 = arith.constant 492 : i32
    %16 = tpu.dynamic_rotate %1 by %c492_i32 dim 1 : vector<8x512xf32>, i32 -> vector<8x512xf32>
    %17 = vector.extract_strided_slice %16 {offsets = [0, 0], sizes = [8, 384], strides = [1, 1]} : vector<8x512xf32> to vector<8x384xf32>
    %c40 = arith.constant 40 : index
    %c0_8 = arith.constant 0 : index
    %18 = vector.load %arg4[%c40, %c0_8] : memref<200x384xf32, #tpu.memory_space<vmem>>, vector<8x384xf32>
    tpu.vector_store %arg4[%c40, %c0_8], %17 {strides = array<i32>} : memref<200x384xf32, #tpu.memory_space<vmem>>, vector<8x384xf32>,
    %c491_i32 = arith.constant 491 : i32
    %19 = tpu.dynamic_rotate %1 by %c491_i32 dim 1 : vector<8x512xf32>, i32 -> vector<8x512xf32>
    %20 = vector.extract_strided_slice %19 {offsets = [0, 0], sizes = [8, 384], strides = [1, 1]} : vector<8x512xf32> to vector<8x384xf32>
    %c48 = arith.constant 48 : index
    %c0_9 = arith.constant 0 : index
    %21 = vector.load %arg4[%c48, %c0_9] : memref<200x384xf32, #tpu.memory_space<vmem>>, vector<8x384xf32>
    tpu.vector_store %arg4[%c48, %c0_9], %20 {strides = array<i32>} : memref<200x384xf32, #tpu.memory_space<vmem>>, vector<8x384xf32>,
    %c490_i32 = arith.constant 490 : i32
    %22 = tpu.dynamic_rotate %1 by %c490_i32 dim 1 : vector<8x512xf32>, i32 -> vector<8x512xf32>
    %23 = vector.extract_strided_slice %22 {offsets = [0, 0], sizes = [8, 384], strides = [1, 1]} : vector<8x512xf32> to vector<8x384xf32>
    %c56 = arith.constant 56 : index
    %c0_10 = arith.constant 0 : index
    %24 = vector.load %arg4[%c56, %c0_10] : memref<200x384xf32, #tpu.memory_space<vmem>>, vector<8x384xf32>
    tpu.vector_store %arg4[%c56, %c0_10], %23 {strides = array<i32>} : memref<200x384xf32, #tpu.memory_space<vmem>>, vector<8x384xf32>,
    %c489_i32 = arith.constant 489 : i32
    %25 = tpu.dynamic_rotate %1 by %c489_i32 dim 1 : vector<8x512xf32>, i32 -> vector<8x512xf32>
    %26 = vector.extract_strided_slice %25 {offsets = [0, 0], sizes = [8, 384], strides = [1, 1]} : vector<8x512xf32> to vector<8x384xf32>
    %c64 = arith.constant 64 : index
    %c0_11 = arith.constant 0 : index
    %27 = vector.load %arg4[%c64, %c0_11] : memref<200x384xf32, #tpu.memory_space<vmem>>, vector<8x384xf32>
    tpu.vector_store %arg4[%c64, %c0_11], %26 {strides = array<i32>} : memref<200x384xf32, #tpu.memory_space<vmem>>, vector<8x384xf32>,
    %c488_i32 = arith.constant 488 : i32
    %28 = tpu.dynamic_rotate %1 by %c488_i32 dim 1 : vector<8x512xf32>, i32 -> vector<8x512xf32>
    %29 = vector.extract_strided_slice %28 {offsets = [0, 0], sizes = [8, 384], strides = [1, 1]} : vector<8x512xf32> to vector<8x384xf32>
    %c72 = arith.constant 72 : index
    %c0_12 = arith.constant 0 : index
    %30 = vector.load %arg4[%c72, %c0_12] : memref<200x384xf32, #tpu.memory_space<vmem>>, vector<8x384xf32>
    tpu.vector_store %arg4[%c72, %c0_12], %29 {strides = array<i32>} : memref<200x384xf32, #tpu.memory_space<vmem>>, vector<8x384xf32>,
    %c472_i32 = arith.constant 472 : i32
    %31 = tpu.dynamic_rotate %1 by %c472_i32 dim 1 : vector<8x512xf32>, i32 -> vector<8x512xf32>
    %32 = vector.extract_strided_slice %31 {offsets = [0, 0], sizes = [8, 384], strides = [1, 1]} : vector<8x512xf32> to vector<8x384xf32>
    %c80 = arith.constant 80 : index
    %c0_13 = arith.constant 0 : index
    %33 = vector.load %arg4[%c80, %c0_13] : memref<200x384xf32, #tpu.memory_space<vmem>>, vector<8x384xf32>
    tpu.vector_store %arg4[%c80, %c0_13], %32 {strides = array<i32>} : memref<200x384xf32, #tpu.memory_space<vmem>>, vector<8x384xf32>,
    %c471_i32 = arith.constant 471 : i32
    %34 = tpu.dynamic_rotate %1 by %c471_i32 dim 1 : vector<8x512xf32>, i32 -> vector<8x512xf32>
    %35 = vector.extract_strided_slice %34 {offsets = [0, 0], sizes = [8, 384], strides = [1, 1]} : vector<8x512xf32> to vector<8x384xf32>
    %c88 = arith.constant 88 : index
    %c0_14 = arith.constant 0 : index
    %36 = vector.load %arg4[%c88, %c0_14] : memref<200x384xf32, #tpu.memory_space<vmem>>, vector<8x384xf32>
    tpu.vector_store %arg4[%c88, %c0_14], %35 {strides = array<i32>} : memref<200x384xf32, #tpu.memory_space<vmem>>, vector<8x384xf32>,
    %c470_i32 = arith.constant 470 : i32
    %37 = tpu.dynamic_rotate %1 by %c470_i32 dim 1 : vector<8x512xf32>, i32 -> vector<8x512xf32>
    %38 = vector.extract_strided_slice %37 {offsets = [0, 0], sizes = [8, 384], strides = [1, 1]} : vector<8x512xf32> to vector<8x384xf32>
    %c96 = arith.constant 96 : index
    %c0_15 = arith.constant 0 : index
    %39 = vector.load %arg4[%c96, %c0_15] : memref<200x384xf32, #tpu.memory_space<vmem>>, vector<8x384xf32>
    tpu.vector_store %arg4[%c96, %c0_15], %38 {strides = array<i32>} : memref<200x384xf32, #tpu.memory_space<vmem>>, vector<8x384xf32>,
    %c469_i32 = arith.constant 469 : i32
    %40 = tpu.dynamic_rotate %1 by %c469_i32 dim 1 : vector<8x512xf32>, i32 -> vector<8x512xf32>
    %41 = vector.extract_strided_slice %40 {offsets = [0, 0], sizes = [8, 384], strides = [1, 1]} : vector<8x512xf32> to vector<8x384xf32>
    %c104 = arith.constant 104 : index
    %c0_16 = arith.constant 0 : index
    %42 = vector.load %arg4[%c104, %c0_16] : memref<200x384xf32, #tpu.memory_space<vmem>>, vector<8x384xf32>
    tpu.vector_store %arg4[%c104, %c0_16], %41 {strides = array<i32>} : memref<200x384xf32, #tpu.memory_space<vmem>>, vector<8x384xf32>,
    %c468_i32 = arith.constant 468 : i32
    %43 = tpu.dynamic_rotate %1 by %c468_i32 dim 1 : vector<8x512xf32>, i32 -> vector<8x512xf32>
    %44 = vector.extract_strided_slice %43 {offsets = [0, 0], sizes = [8, 384], strides = [1, 1]} : vector<8x512xf32> to vector<8x384xf32>
    %c112 = arith.constant 112 : index
    %c0_17 = arith.constant 0 : index
    %45 = vector.load %arg4[%c112, %c0_17] : memref<200x384xf32, #tpu.memory_space<vmem>>, vector<8x384xf32>
    tpu.vector_store %arg4[%c112, %c0_17], %44 {strides = array<i32>} : memref<200x384xf32, #tpu.memory_space<vmem>>, vector<8x384xf32>,
    %c452_i32 = arith.constant 452 : i32
    %46 = tpu.dynamic_rotate %1 by %c452_i32 dim 1 : vector<8x512xf32>, i32 -> vector<8x512xf32>
    %47 = vector.extract_strided_slice %46 {offsets = [0, 0], sizes = [8, 384], strides = [1, 1]} : vector<8x512xf32> to vector<8x384xf32>
    %c120 = arith.constant 120 : index
    %c0_18 = arith.constant 0 : index
    %48 = vector.load %arg4[%c120, %c0_18] : memref<200x384xf32, #tpu.memory_space<vmem>>, vector<8x384xf32>
    tpu.vector_store %arg4[%c120, %c0_18], %47 {strides = array<i32>} : memref<200x384xf32, #tpu.memory_space<vmem>>, vector<8x384xf32>,
    %c451_i32 = arith.constant 451 : i32
    %49 = tpu.dynamic_rotate %1 by %c451_i32 dim 1 : vector<8x512xf32>, i32 -> vector<8x512xf32>
    %50 = vector.extract_strided_slice %49 {offsets = [0, 0], sizes = [8, 384], strides = [1, 1]} : vector<8x512xf32> to vector<8x384xf32>
    %c128 = arith.constant 128 : index
    %c0_19 = arith.constant 0 : index
    %51 = vector.load %arg4[%c128, %c0_19] : memref<200x384xf32, #tpu.memory_space<vmem>>, vector<8x384xf32>
    tpu.vector_store %arg4[%c128, %c0_19], %50 {strides = array<i32>} : memref<200x384xf32, #tpu.memory_space<vmem>>, vector<8x384xf32>,
    %c450_i32 = arith.constant 450 : i32
    %52 = tpu.dynamic_rotate %1 by %c450_i32 dim 1 : vector<8x512xf32>, i32 -> vector<8x512xf32>
    %53 = vector.extract_strided_slice %52 {offsets = [0, 0], sizes = [8, 384], strides = [1, 1]} : vector<8x512xf32> to vector<8x384xf32>
    %c136 = arith.constant 136 : index
    %c0_20 = arith.constant 0 : index
    %54 = vector.load %arg4[%c136, %c0_20] : memref<200x384xf32, #tpu.memory_space<vmem>>, vector<8x384xf32>
    tpu.vector_store %arg4[%c136, %c0_20], %53 {strides = array<i32>} : memref<200x384xf32, #tpu.memory_space<vmem>>, vector<8x384xf32>,
    %c449_i32 = arith.constant 449 : i32
    %55 = tpu.dynamic_rotate %1 by %c449_i32 dim 1 : vector<8x512xf32>, i32 -> vector<8x512xf32>
    %56 = vector.extract_strided_slice %55 {offsets = [0, 0], sizes = [8, 384], strides = [1, 1]} : vector<8x512xf32> to vector<8x384xf32>
    %c144 = arith.constant 144 : index
    %c0_21 = arith.constant 0 : index
    %57 = vector.load %arg4[%c144, %c0_21] : memref<200x384xf32, #tpu.memory_space<vmem>>, vector<8x384xf32>
    tpu.vector_store %arg4[%c144, %c0_21], %56 {strides = array<i32>} : memref<200x384xf32, #tpu.memory_space<vmem>>, vector<8x384xf32>,
    %c448_i32 = arith.constant 448 : i32
    %58 = tpu.dynamic_rotate %1 by %c448_i32 dim 1 : vector<8x512xf32>, i32 -> vector<8x512xf32>
    %59 = vector.extract_strided_slice %58 {offsets = [0, 0], sizes = [8, 384], strides = [1, 1]} : vector<8x512xf32> to vector<8x384xf32>
    %c152 = arith.constant 152 : index
    %c0_22 = arith.constant 0 : index
    %60 = vector.load %arg4[%c152, %c0_22] : memref<200x384xf32, #tpu.memory_space<vmem>>, vector<8x384xf32>
    tpu.vector_store %arg4[%c152, %c0_22], %59 {strides = array<i32>} : memref<200x384xf32, #tpu.memory_space<vmem>>, vector<8x384xf32>,
    %c432_i32 = arith.constant 432 : i32
    %61 = tpu.dynamic_rotate %1 by %c432_i32 dim 1 : vector<8x512xf32>, i32 -> vector<8x512xf32>
    %62 = vector.extract_strided_slice %61 {offsets = [0, 0], sizes = [8, 384], strides = [1, 1]} : vector<8x512xf32> to vector<8x384xf32>
    %c160 = arith.constant 160 : index
    %c0_23 = arith.constant 0 : index
    %63 = vector.load %arg4[%c160, %c0_23] : memref<200x384xf32, #tpu.memory_space<vmem>>, vector<8x384xf32>
    tpu.vector_store %arg4[%c160, %c0_23], %62 {strides = array<i32>} : memref<200x384xf32, #tpu.memory_space<vmem>>, vector<8x384xf32>,
    %c431_i32 = arith.constant 431 : i32
    %64 = tpu.dynamic_rotate %1 by %c431_i32 dim 1 : vector<8x512xf32>, i32 -> vector<8x512xf32>
    %65 = vector.extract_strided_slice %64 {offsets = [0, 0], sizes = [8, 384], strides = [1, 1]} : vector<8x512xf32> to vector<8x384xf32>
    %c168 = arith.constant 168 : index
    %c0_24 = arith.constant 0 : index
    %66 = vector.load %arg4[%c168, %c0_24] : memref<200x384xf32, #tpu.memory_space<vmem>>, vector<8x384xf32>
    tpu.vector_store %arg4[%c168, %c0_24], %65 {strides = array<i32>} : memref<200x384xf32, #tpu.memory_space<vmem>>, vector<8x384xf32>,
    %c430_i32 = arith.constant 430 : i32
    %67 = tpu.dynamic_rotate %1 by %c430_i32 dim 1 : vector<8x512xf32>, i32 -> vector<8x512xf32>
    %68 = vector.extract_strided_slice %67 {offsets = [0, 0], sizes = [8, 384], strides = [1, 1]} : vector<8x512xf32> to vector<8x384xf32>
    %c176 = arith.constant 176 : index
    %c0_25 = arith.constant 0 : index
    %69 = vector.load %arg4[%c176, %c0_25] : memref<200x384xf32, #tpu.memory_space<vmem>>, vector<8x384xf32>
    tpu.vector_store %arg4[%c176, %c0_25], %68 {strides = array<i32>} : memref<200x384xf32, #tpu.memory_space<vmem>>, vector<8x384xf32>,
    %c429_i32 = arith.constant 429 : i32
    %70 = tpu.dynamic_rotate %1 by %c429_i32 dim 1 : vector<8x512xf32>, i32 -> vector<8x512xf32>
    %71 = vector.extract_strided_slice %70 {offsets = [0, 0], sizes = [8, 384], strides = [1, 1]} : vector<8x512xf32> to vector<8x384xf32>
    %c184 = arith.constant 184 : index
    %c0_26 = arith.constant 0 : index
    %72 = vector.load %arg4[%c184, %c0_26] : memref<200x384xf32, #tpu.memory_space<vmem>>, vector<8x384xf32>
    tpu.vector_store %arg4[%c184, %c0_26], %71 {strides = array<i32>} : memref<200x384xf32, #tpu.memory_space<vmem>>, vector<8x384xf32>,
    %c428_i32 = arith.constant 428 : i32
    %73 = tpu.dynamic_rotate %1 by %c428_i32 dim 1 : vector<8x512xf32>, i32 -> vector<8x512xf32>
    %74 = vector.extract_strided_slice %73 {offsets = [0, 0], sizes = [8, 384], strides = [1, 1]} : vector<8x512xf32> to vector<8x384xf32>
    %c192 = arith.constant 192 : index
    %c0_27 = arith.constant 0 : index
    %75 = vector.load %arg4[%c192, %c0_27] : memref<200x384xf32, #tpu.memory_space<vmem>>, vector<8x384xf32>
    tpu.vector_store %arg4[%c192, %c0_27], %74 {strides = array<i32>} : memref<200x384xf32, #tpu.memory_space<vmem>>, vector<8x384xf32>,
    %c0_28 = arith.constant 0 : index
    %c0_29 = arith.constant 0 : index
    %76 = vector.load %arg2[%c0_28, %c0_29] : memref<8x200xf32, #tpu.memory_space<vmem>>, vector<8x200xf32>
    %c0_30 = arith.constant 0 : index
    %c0_31 = arith.constant 0 : index
    %77 = vector.load %arg4[%c0_30, %c0_31] : memref<200x384xf32, #tpu.memory_space<vmem>>, vector<200x384xf32>
    %cst = arith.constant dense<0.000000e+00> : vector<8x384xf32>
    %78 = tpu.matmul %76, %77, %cst {dimension_numbers = #tpu.dot_dimension_numbers<[1], [0], [0], [1], [0, 0, 1, 1], [], []>} : vector<8x200xf32>, vector<200x384xf32>, vector<8x384xf32> -> vector<8x384xf32>
    %c0_32 = arith.constant 0 : index
    %c0_33 = arith.constant 0 : index
    %c0_34 = arith.constant 0 : index
    %79 = vector.load %arg3[%c0_32, %c0_33, %c0_34] : memref<1x8x384xf32, #tpu.memory_space<vmem>>, vector<1x8x384xf32>
    %80 = vector.shape_cast %79 : vector<1x8x384xf32> to vector<8x384xf32>
    %81 = vector.shape_cast %78 : vector<8x384xf32> to vector<1x8x384xf32>
    tpu.vector_store %arg3[%c0_32, %c0_33, %c0_34], %81 {strides = array<i32>} : memref<1x8x384xf32, #tpu.memory_space<vmem>>, vector<1x8x384xf32>,
    return
  }
  func.func @transform_0(%arg0: i32) -> (i32, i32, i32) {
    %c0_i32 = arith.constant 0 : i32
    %c0_i32_0 = arith.constant 0 : i32
    %c0_i32_1 = arith.constant 0 : i32
    return %arg0, %c0_i32, %c0_i32_0 : i32, i32, i32
  }
  func.func @transform_1(%arg0: i32) -> (i32, i32) {
    %c0_i32 = arith.constant 0 : i32
    %c0_i32_0 = arith.constant 0 : i32
    %c0_i32_1 = arith.constant 0 : i32
    return %c0_i32, %c0_i32_0 : i32, i32
  }
  func.func @transform_2(%arg0: i32) -> (i32, i32, i32) {
    %c0_i32 = arith.constant 0 : i32
    %c0_i32_0 = arith.constant 0 : i32
    %c0_i32_1 = arith.constant 0 : i32
    return %arg0, %c0_i32, %c0_i32_0 : i32, i32, i32
  }
}

</mosaic_0001>

<llo_original>
// kernel: tpu_custom_call.1
$region0: #{tpu_custom_call.1}
  #allocation0 [shape = 'u32[]', space=smem, size = 0x4, offset = 0x4, fixed_abs, tag = 'smem constant byte address 0x4 - core index']
  #allocation1 [shape = 'u32[72,128]{1,0:T(1,128)}', space=vmem, size = 0x9000, scoped, tag = 'internal scratch']
  #allocation2 [shape = 'f32[200,384]{1,0:T(8,128)}', space=vmem, size = 0x4b000, scoped, tag = 'scratch operand']
  %s0 = inlined_call_operand.hbm [shape: f32[2,8,512], index: 0, kind: input, shape index: {}]
  %s1 = inlined_call_operand.hbm [shape: f32[8,200], index: 1, kind: input, shape index: {}]
  %s2 = inlined_call_operand.hbm [shape: f32[2,8,384], index: 2, kind: output, shape index: {}]
  %s3 = sld [smem:[#allocation0]]
  $region49: #{tpu_custom_call.1} parent=0
    _
  %s5 = ssub.s32 1, %s3
  %s6 = scalar_select 0, %s5, %s3
  $region1: #{tpu_custom_call.1} parent=0
    #allocation3 [shape = 'u8[32768]{0}', space=vmem, size = 0x8000, scoped, tag = 'input window, operand 0']
    #allocation4 [shape = 's32[2]{0}', space=sflag, size = 0x8, scoped, tag = 'scoped memory for tpu_custom_call.1']
    #allocation5 [shape = 's32[2]{0}', space=sflag, size = 0x8, scoped, tag = 'scoped memory for tpu_custom_call.1']
    #allocation6 [shape = 'u8[8192]{0}', space=vmem, size = 0x2000, scoped, tag = 'input window, operand 1, single buffered']
    #allocation7 [shape = 's32[1]{0}', space=sflag, size = 0x4, scoped, tag = 'scoped memory for tpu_custom_call.1']
    #allocation8 [shape = 'u8[24576]{0}', space=vmem, size = 0x6000, scoped, tag = 'output window, operand 0']
    %7 = vsyncpa [#allocation4], 0
    %s8 = scalar_lea.sflag [#allocation4], 1
    %9 = vsyncpa %s8, 0
    %10 = vsyncpa [#allocation7], 0
    %11 = vsyncpa [#allocation5], 0
    %s12 = scalar_lea.sflag [#allocation5], 1
    %13 = vsyncpa %s12, 0
    loop: start=0, step=1, limit=4
    $region2: #{tpu_custom_call.1} parent=1 // loop_pre_header
      _
    $region3: #{tpu_custom_call.1} parent=1 // loop_header
      %s15 = sphi 0, %s19
      %p16 = scmp.ge.s32.totalorder %s15, 4
      %s25 = sphi 0, %s27
      %s28 = sphi 0, %s25
      %s29 = sphi 0, %s28
      %s45 = sphi 0, %s29
      %s49 = sphi 0, %s49
      %s51 = sphi 0, %s49
      %s52 = sphi 0, %s51
      %s66 = sphi 0, %s52
      %s72 = sphi 0, %s74
      %s75 = sphi 0, %s72
      %s76 = sphi 0, %s75
      %s92 = sphi 0, %s76
    $region4: #{tpu_custom_call.1} parent=1 // loop_header_branch
      %18 = sbr.rel (%p16) target = $region8
    $region5: #{tpu_custom_call.1} parent=1 // loop_body
      %s20 = ssub.s32 %s15, 1
      %s21 = ssub.s32 %s15, 2
      %s22 = sadd.s32 %s15, 1
      %s23 = ssub.s32 %s15, %s22
      %p24 = scmp.eq.s32.totalorder %s23, 0
      %s26 = sadd.s32 %s25, 1
      %s27 = scalar_select %p24, %s25, %s26
      %p30 = pneg %p24
      %p31 = scmp.eq.s32.totalorder %s15, 1
      %p32 = por %p30, %p31
      %p33 = scmp.ne.s32.totalorder %s25, %s28
      %p34 = scmp.eq.s32.totalorder %s15, 0
      %p35 = por %p33, %p34
      %p36 = scmp.ne.s32.totalorder %s25, %s28
      %p37 = scmp.eq.s32.totalorder %s20, 1
      %p38 = por %p36, %p37
      %p39 = scmp.ne.s32.totalorder %s28, %s29
      %p40 = scmp.eq.s32.totalorder %s20, 0
      %p41 = por %p39, %p40
      %p42 = scmp.ne.s32.totalorder %s28, %s29
      %p43 = scmp.eq.s32.totalorder %s21, 1
      %p44 = por %p42, %p43
      %p46 = scmp.ne.s32.totalorder %s29, %s45
      %p47 = scmp.eq.s32.totalorder %s21, 0
      %p48 = por %p46, %p47
      %s50 = sadd.s32 %s49, 1
      %p53 = scmp.eq.s32.totalorder %s15, 1
      %p54 = scmp.ne.s32.totalorder %s49, %s51
      %p55 = scmp.eq.s32.totalorder %s15, 0
      %p56 = por %p54, %p55
      %p57 = scmp.ne.s32.totalorder %s49, %s51
      %p58 = scmp.eq.s32.totalorder %s20, 1
      %p59 = por %p57, %p58
      %p60 = scmp.ne.s32.totalorder %s51, %s52
      %p61 = scmp.eq.s32.totalorder %s20, 0
      %p62 = por %p60, %p61
      %p63 = scmp.ne.s32.totalorder %s51, %s52
      %p64 = scmp.eq.s32.totalorder %s21, 1
      %p65 = por %p63, %p64
      %p67 = scmp.ne.s32.totalorder %s52, %s66
      %p68 = scmp.eq.s32.totalorder %s21, 0
      %p69 = por %p67, %p68
      %s70 = ssub.s32 %s15, %s22
      %p71 = scmp.eq.s32.totalorder %s70, 0
      %s73 = sadd.s32 %s72, 1
      %s74 = scalar_select %p71, %s72, %s73
      %p77 = pneg %p71
      %p78 = scmp.eq.s32.totalorder %s15, 1
      %p79 = por %p77, %p78
      %p80 = scmp.ne.s32.totalorder %s72, %s75
      %p81 = scmp.eq.s32.totalorder %s15, 0
      %p82 = por %p80, %p81
      %p83 = scmp.ne.s32.totalorder %s72, %s75
      %p84 = scmp.eq.s32.totalorder %s20, 1
      %p85 = por %p83, %p84
      %p86 = scmp.ne.s32.totalorder %s75, %s76
      %p87 = scmp.eq.s32.totalorder %s20, 0
      %p88 = por %p86, %p87
      %p89 = scmp.ne.s32.totalorder %s75, %s76
      %p90 = scmp.eq.s32.totalorder %s21, 1
      %p91 = por %p89, %p90
      %p93 = scmp.ne.s32.totalorder %s76, %s92
      %p94 = scmp.eq.s32.totalorder %s21, 0
      %p95 = por %p93, %p94
      %p96 = scmp.le.s32.totalorder 1, %s15
      %p97 = scmp.lt.s32.totalorder %s15, 3
      %p98 = pnand %p96, %p97
      %p99 = pneg %p98
      // Predicated region
      $region9: #{tpu_custom_call.1} parent=5 // pred_check
        _
      $region10: #{tpu_custom_call.1} parent=5 // pred_check_branch
        %101 = sbr.rel (%p98) target = $region12
      $region11: #{tpu_custom_call.1} parent=5 // pred_region
        %s102 = ssub.s32 %s15, 1
        // Predicated region
        $region13: #{tpu_custom_call.1} parent=11 // pred_check
          %p103 = pneg %p62
        $region14: #{tpu_custom_call.1} parent=11 // pred_check_branch
          %105 = sbr.rel (%p103) target = $region16
        $region15: #{tpu_custom_call.1} parent=11 // pred_region
          %107 = vsyncadd [#allocation7], 0
          %s109 = sshll.u32 %s1, 4
          %s110 = int_to_ptr.hbm [resolvable:$true] %s109
          %s111 = sshll.u32 [#allocation6], 4
          %s112 = int_to_ptr.vmem [resolvable:$true] %s111
          %114 = dma.hbm_to_vmem [thread:$0]  %s110, 256, %s112, [#allocation7]
        $region16: #{tpu_custom_call.1} parent=11 // pred_fallthru
          _
      $region12: #{tpu_custom_call.1} parent=5 // pred_fallthru
        _
      %p115 = scmp.lt.s32.totalorder %s15, 2
      // Predicated region
      $region17: #{tpu_custom_call.1} parent=5 // pred_check
        %p116 = pneg %p115
      $region18: #{tpu_custom_call.1} parent=5 // pred_check_branch
        %118 = sbr.rel (%p116) target = $region20
      $region19: #{tpu_custom_call.1} parent=5 // pred_region
        // Predicated region
        $region21: #{tpu_custom_call.1} parent=19 // pred_check
          %p119 = pneg %p35
        $region22: #{tpu_custom_call.1} parent=19 // pred_check_branch
          %121 = sbr.rel (%p119) target = $region24
        $region23: #{tpu_custom_call.1} parent=19 // pred_region
          %s122 = sand.u32 %s25, 1
          %s123 = scalar_lea.sflag [#allocation4], %s122
          %s124 = sand.u32 %s25, 1
          %s125 = smul.addr %s124, 32
          %s126 = scalar_lea.vmem [#allocation3], %s125
          %128 = vsyncadd %s123, 0
          %s129 = smul.addr %s15, 4
          %s130 = smul.addr %s129, 8
          %s131 = scalar_lea.hbm %s0, %s130
          %s133 = sshll.u32 %s131, 4
          %s134 = int_to_ptr.hbm [resolvable:$true] %s133
          %s135 = sshll.u32 %s126, 4
          %s136 = int_to_ptr.vmem [resolvable:$true] %s135
          %138 = dma.hbm_to_vmem [thread:$0]  %s134, 512, %s136, %s123
        $region24: #{tpu_custom_call.1} parent=19 // pred_fallthru
          _
      $region20: #{tpu_custom_call.1} parent=5 // pred_fallthru
        _
      %p139 = scmp.le.s32.totalorder 1, %s15
      %p140 = scmp.lt.s32.totalorder %s15, 3
      %p141 = pnand %p139, %p140
      %p142 = pneg %p141
      // Predicated region
      $region25: #{tpu_custom_call.1} parent=5 // pred_check
        _
      $region26: #{tpu_custom_call.1} parent=5 // pred_check_branch
        %144 = sbr.rel (%p141) target = $region28
      $region27: #{tpu_custom_call.1} parent=5 // pred_region
        %s145 = ssub.s32 %s15, 1
        %s146 = sand.u32 %s28, 1
        %s147 = scalar_lea.sflag [#allocation4], %s146
        %s148 = sand.u32 %s28, 1
        %s149 = smul.addr %s148, 32
        %s150 = scalar_lea.vmem [#allocation3], %s149
        // Predicated region
        $region29: #{tpu_custom_call.1} parent=27 // pred_check
          %p151 = pneg %p41
        $region30: #{tpu_custom_call.1} parent=27 // pred_check_branch
          %153 = sbr.rel (%p151) target = $region32
        $region31: #{tpu_custom_call.1} parent=27 // pred_region
          %155 = dma.done %s147, 512
        $region32: #{tpu_custom_call.1} parent=27 // pred_fallthru
          _
        // Predicated region
        $region33: #{tpu_custom_call.1} parent=27 // pred_check
          %p156 = pneg %p62
        $region34: #{tpu_custom_call.1} parent=27 // pred_check_branch
          %158 = sbr.rel (%p156) target = $region36
        $region35: #{tpu_custom_call.1} parent=27 // pred_region
          %160 = dma.done [#allocation7], 256
        $region36: #{tpu_custom_call.1} parent=27 // pred_fallthru
          _
        %s161 = sand.u32 %s28, 1
        %s162 = scalar_lea.sflag [#allocation4], %s161
        %s163 = sand.u32 %s28, 1
        %s164 = smul.addr %s163, 32
        %s165 = scalar_lea.vmem [#allocation3], %s164
        %p166 = pneg %p41
        %p167 = pneg %p38
        %p168 = pneg %p62
        %p169 = pneg %p59
        %p170 = pneg %p88
        %p171 = pneg %p85
        %s172 = sand.u32 %s75, 1
        %s173 = scalar_lea.sflag [#allocation5], %s172
        %s174 = sand.u32 %s75, 1
        %s175 = smul.addr %s174, 24
        %s176 = scalar_lea.vmem [#allocation8], %s175
        %v177 = vld [vmem:[%s150] sm:$0xff]
        %v178 = vld [vmem:[%s150 + $0x8] sm:$0xff]
        %v179 = vld [vmem:[%s150 + $0x10] sm:$0xff]
        %v180 = vld [vmem:[%s150 + $0x18] sm:$0xff]
        %181 = vst [vmem:[#allocation2] sm:$0xff] %v177
        %182 = vst [vmem:[#allocation2 + $0x8] sm:$0xff] %v178
        %183 = vst [vmem:[#allocation2 + $0x10] sm:$0xff] %v179
        %184 = vrot.lane.b32.xlu0 %v177, 127
        %v185 = vpop.permute.xlu0 %184
        %186 = vrot.lane.b32.xlu0 %v178, 127
        %v187 = vpop.permute.xlu0 %186
        %188 = vrot.lane.b32.xlu0 %v179, 127
        %v189 = vpop.permute.xlu0 %188
        %190 = vrot.lane.b32.xlu0 %v180, 127
        %v191 = vpop.permute.xlu0 %190
        %v192 = vlaneseq
        %v193 = vand.u32 %v192, 127
        %vm194 = vcmp.lt.s32.totalorder %v193, 127
        %v195 = vsel %vm194, %v189, %v191
        %v196 = vsel %vm194, %v187, %v189
        %v197 = vsel %vm194, %v185, %v187
        %198 = vst [vmem:[#allocation2 + $0x18] sm:$0xff] %v197
        %199 = vst [vmem:[#allocation2 + $0x20] sm:$0xff] %v196
        %200 = vst [vmem:[#allocation2 + $0x28] sm:$0xff] %v195
        %201 = vrot.lane.b32.xlu0 %v177, 126
        %v202 = vpop.permute.xlu0 %201
        %203 = vrot.lane.b32.xlu0 %v178, 126
        %v204 = vpop.permute.xlu0 %203
        %205 = vrot.lane.b32.xlu0 %v179, 126
        %v206 = vpop.permute.xlu0 %205
        %207 = vrot.lane.b32.xlu0 %v180, 126
        %v208 = vpop.permute.xlu0 %207
        %vm209 = vcmp.lt.s32.totalorder %v193, 126
        %v210 = vsel %vm209, %v206, %v208
        %v211 = vsel %vm209, %v204, %v206
        %v212 = vsel %vm209, %v202, %v204
        %213 = vst [vmem:[#allocation2 + $0x30] sm:$0xff] %v212
        %214 = vst [vmem:[#allocation2 + $0x38] sm:$0xff] %v211
        %215 = vst [vmem:[#allocation2 + $0x40] sm:$0xff] %v210
        %216 = vrot.lane.b32.xlu0 %v177, 125
        %v217 = vpop.permute.xlu0 %216
        %218 = vrot.lane.b32.xlu0 %v178, 125
        %v219 = vpop.permute.xlu0 %218
        %220 = vrot.lane.b32.xlu0 %v179, 125
        %v221 = vpop.permute.xlu0 %220
        %222 = vrot.lane.b32.xlu0 %v180, 125
        %v223 = vpop.permute.xlu0 %222
        %vm224 = vcmp.lt.s32.totalorder %v193, 125
        %v225 = vsel %vm224, %v221, %v223
        %v226 = vsel %vm224, %v219, %v221
        %v227 = vsel %vm224, %v217, %v219
        %228 = vst [vmem:[#allocation2 + $0x48] sm:$0xff] %v227
        %229 = vst [vmem:[#allocation2 + $0x50] sm:$0xff] %v226
        %230 = vst [vmem:[#allocation2 + $0x58] sm:$0xff] %v225
        %231 = vrot.lane.b32.xlu0 %v177, 124
        %v232 = vpop.permute.xlu0 %231
        %233 = vrot.lane.b32.xlu0 %v178, 124
        %v234 = vpop.permute.xlu0 %233
        %235 = vrot.lane.b32.xlu0 %v179, 124
        %v236 = vpop.permute.xlu0 %235
        %237 = vrot.lane.b32.xlu0 %v180, 124
        %v238 = vpop.permute.xlu0 %237
        %vm239 = vcmp.lt.s32.totalorder %v193, 124
        %v240 = vsel %vm239, %v236, %v238
        %v241 = vsel %vm239, %v234, %v236
        %v242 = vsel %vm239, %v232, %v234
        %243 = vst [vmem:[#allocation2 + $0x60] sm:$0xff] %v242
        %244 = vst [vmem:[#allocation2 + $0x68] sm:$0xff] %v241
        %245 = vst [vmem:[#allocation2 + $0x70] sm:$0xff] %v240
        %246 = vrot.lane.b32.xlu0 %v177, 108
        %v247 = vpop.permute.xlu0 %246
        %248 = vrot.lane.b32.xlu0 %v178, 108
        %v249 = vpop.permute.xlu0 %248
        %250 = vrot.lane.b32.xlu0 %v179, 108
        %v251 = vpop.permute.xlu0 %250
        %252 = vrot.lane.b32.xlu0 %v180, 108
        %v253 = vpop.permute.xlu0 %252
        %vm254 = vcmp.lt.s32.totalorder %v193, 108
        %v255 = vsel %vm254, %v251, %v253
        %v256 = vsel %vm254, %v249, %v251
        %v257 = vsel %vm254, %v247, %v249
        %258 = vst [vmem:[#allocation2 + $0x78] sm:$0xff] %v257
        %259 = vst [vmem:[#allocation2 + $0x80] sm:$0xff] %v256
        %260 = vst [vmem:[#allocation2 + $0x88] sm:$0xff] %v255
        %261 = vrot.lane.b32.xlu0 %v177, 107
        %v262 = vpop.permute.xlu0 %261
        %263 = vrot.lane.b32.xlu0 %v178, 107
        %v264 = vpop.permute.xlu0 %263
        %265 = vrot.lane.b32.xlu0 %v179, 107
        %v266 = vpop.permute.xlu0 %265
        %267 = vrot.lane.b32.xlu0 %v180, 107
        %v268 = vpop.permute.xlu0 %267
        %vm269 = vcmp.lt.s32.totalorder %v193, 107
        %v270 = vsel %vm269, %v266, %v268
        %v271 = vsel %vm269, %v264, %v266
        %v272 = vsel %vm269, %v262, %v264
        %273 = vst [vmem:[#allocation2 + $0x90] sm:$0xff] %v272
        %274 = vst [vmem:[#allocation2 + $0x98] sm:$0xff] %v271
        %275 = vst [vmem:[#allocation2 + $0xa0] sm:$0xff] %v270
        %276 = vrot.lane.b32.xlu0 %v177, 106
        %v277 = vpop.permute.xlu0 %276
        %278 = vrot.lane.b32.xlu0 %v178, 106
        %v279 = vpop.permute.xlu0 %278
        %280 = vrot.lane.b32.xlu0 %v179, 106
        %v281 = vpop.permute.xlu0 %280
        %282 = vrot.lane.b32.xlu0 %v180, 106
        %v283 = vpop.permute.xlu0 %282
        %vm284 = vcmp.lt.s32.totalorder %v193, 106
        %v285 = vsel %vm284, %v281, %v283
        %v286 = vsel %vm284, %v279, %v281
        %v287 = vsel %vm284, %v277, %v279
        %288 = vst [vmem:[#allocation2 + $0xa8] sm:$0xff] %v287
        %289 = vst [vmem:[#allocation2 + $0xb0] sm:$0xff] %v286
        %290 = vst [vmem:[#allocation2 + $0xb8] sm:$0xff] %v285
        %291 = vrot.lane.b32.xlu0 %v177, 105
        %v292 = vpop.permute.xlu0 %291
        %293 = vrot.lane.b32.xlu0 %v178, 105
        %v294 = vpop.permute.xlu0 %293
        %295 = vrot.lane.b32.xlu0 %v179, 105
        %v296 = vpop.permute.xlu0 %295
        %297 = vrot.lane.b32.xlu0 %v180, 105
        %v298 = vpop.permute.xlu0 %297
        %vm299 = vcmp.lt.s32.totalorder %v193, 105
        %v300 = vsel %vm299, %v296, %v298
        %v301 = vsel %vm299, %v294, %v296
        %v302 = vsel %vm299, %v292, %v294
        %303 = vst [vmem:[#allocation2 + $0xc0] sm:$0xff] %v302
        %304 = vst [vmem:[#allocation2 + $0xc8] sm:$0xff] %v301
        %305 = vst [vmem:[#allocation2 + $0xd0] sm:$0xff] %v300
        %306 = vrot.lane.b32.xlu0 %v177, 104
        %v307 = vpop.permute.xlu0 %306
        %308 = vrot.lane.b32.xlu0 %v178, 104
        %v309 = vpop.permute.xlu0 %308
        %310 = vrot.lane.b32.xlu0 %v179, 104
        %v311 = vpop.permute.xlu0 %310
        %312 = vrot.lane.b32.xlu0 %v180, 104
        %v313 = vpop.permute.xlu0 %312
        %vm314 = vcmp.lt.s32.totalorder %v193, 104
        %v315 = vsel %vm314, %v311, %v313
        %v316 = vsel %vm314, %v309, %v311
        %v317 = vsel %vm314, %v307, %v309
        %318 = vst [vmem:[#allocation2 + $0xd8] sm:$0xff] %v317
        %319 = vst [vmem:[#allocation2 + $0xe0] sm:$0xff] %v316
        %320 = vst [vmem:[#allocation2 + $0xe8] sm:$0xff] %v315
        %321 = vrot.lane.b32.xlu0 %v177, 88
        %v322 = vpop.permute.xlu0 %321
        %323 = vrot.lane.b32.xlu0 %v178, 88
        %v324 = vpop.permute.xlu0 %323
        %325 = vrot.lane.b32.xlu0 %v179, 88
        %v326 = vpop.permute.xlu0 %325
        %327 = vrot.lane.b32.xlu0 %v180, 88
        %v328 = vpop.permute.xlu0 %327
        %vm329 = vcmp.lt.s32.totalorder %v193, 88
        %v330 = vsel %vm329, %v326, %v328
        %v331 = vsel %vm329, %v324, %v326
        %v332 = vsel %vm329, %v322, %v324
        %333 = vst [vmem:[#allocation2 + $0xf0] sm:$0xff] %v332
        %334 = vst [vmem:[#allocation2 + $0xf8] sm:$0xff] %v331
        %335 = vst [vmem:[#allocation2 + $0x100] sm:$0xff] %v330
        %336 = vrot.lane.b32.xlu0 %v177, 87
        %v337 = vpop.permute.xlu0 %336
        %338 = vrot.lane.b32.xlu0 %v178, 87
        %v339 = vpop.permute.xlu0 %338
        %340 = vrot.lane.b32.xlu0 %v179, 87
        %v341 = vpop.permute.xlu0 %340
        %342 = vrot.lane.b32.xlu0 %v180, 87
        %v343 = vpop.permute.xlu0 %342
        %vm344 = vcmp.lt.s32.totalorder %v193, 87
        %v345 = vsel %vm344, %v341, %v343
        %v346 = vsel %vm344, %v339, %v341
        %v347 = vsel %vm344, %v337, %v339
        %348 = vst [vmem:[#allocation2 + $0x108] sm:$0xff] %v347
        %349 = vst [vmem:[#allocation2 + $0x110] sm:$0xff] %v346
        %350 = vst [vmem:[#allocation2 + $0x118] sm:$0xff] %v345
        %351 = vrot.lane.b32.xlu0 %v177, 86
        %v352 = vpop.permute.xlu0 %351
        %353 = vrot.lane.b32.xlu0 %v178, 86
        %v354 = vpop.permute.xlu0 %353
        %355 = vrot.lane.b32.xlu0 %v179, 86
        %v356 = vpop.permute.xlu0 %355
        %357 = vrot.lane.b32.xlu0 %v180, 86
        %v358 = vpop.permute.xlu0 %357
        %vm359 = vcmp.lt.s32.totalorder %v193, 86
        %v360 = vsel %vm359, %v356, %v358
        %v361 = vsel %vm359, %v354, %v356
        %v362 = vsel %vm359, %v352, %v354
        %363 = vst [vmem:[#allocation2 + $0x120] sm:$0xff] %v362
        %364 = vst [vmem:[#allocation2 + $0x128] sm:$0xff] %v361
        %365 = vst [vmem:[#allocation2 + $0x130] sm:$0xff] %v360
        %366 = vrot.lane.b32.xlu0 %v177, 85
        %v367 = vpop.permute.xlu0 %366
        %368 = vrot.lane.b32.xlu0 %v178, 85
        %v369 = vpop.permute.xlu0 %368
        %370 = vrot.lane.b32.xlu0 %v179, 85
        %v371 = vpop.permute.xlu0 %370
        %372 = vrot.lane.b32.xlu0 %v180, 85
        %v373 = vpop.permute.xlu0 %372
        %vm374 = vcmp.lt.s32.totalorder %v193, 85
        %v375 = vsel %vm374, %v371, %v373
        %v376 = vsel %vm374, %v369, %v371
        %v377 = vsel %vm374, %v367, %v369
        %378 = vst [vmem:[#allocation2 + $0x138] sm:$0xff] %v377
        %379 = vst [vmem:[#allocation2 + $0x140] sm:$0xff] %v376
        %380 = vst [vmem:[#allocation2 + $0x148] sm:$0xff] %v375
        %381 = vrot.lane.b32.xlu0 %v177, 84
        %v382 = vpop.permute.xlu0 %381
        %383 = vrot.lane.b32.xlu0 %v178, 84
        %v384 = vpop.permute.xlu0 %383
        %385 = vrot.lane.b32.xlu0 %v179, 84
        %v386 = vpop.permute.xlu0 %385
        %387 = vrot.lane.b32.xlu0 %v180, 84
        %v388 = vpop.permute.xlu0 %387
        %vm389 = vcmp.lt.s32.totalorder %v193, 84
        %v390 = vsel %vm389, %v386, %v388
        %v391 = vsel %vm389, %v384, %v386
        %v392 = vsel %vm389, %v382, %v384
        %393 = vst [vmem:[#allocation2 + $0x150] sm:$0xff] %v392
        %394 = vst [vmem:[#allocation2 + $0x158] sm:$0xff] %v391
        %395 = vst [vmem:[#allocation2 + $0x160] sm:$0xff] %v390
        %396 = vrot.lane.b32.xlu0 %v177, 68
        %v397 = vpop.permute.xlu0 %396
        %398 = vrot.lane.b32.xlu0 %v178, 68
        %v399 = vpop.permute.xlu0 %398
        %400 = vrot.lane.b32.xlu0 %v179, 68
        %v401 = vpop.permute.xlu0 %400
        %402 = vrot.lane.b32.xlu0 %v180, 68
        %v403 = vpop.permute.xlu0 %402
        %vm404 = vcmp.lt.s32.totalorder %v193, 68
        %v405 = vsel %vm404, %v401, %v403
        %v406 = vsel %vm404, %v399, %v401
        %v407 = vsel %vm404, %v397, %v399
        %408 = vst [vmem:[#allocation2 + $0x168] sm:$0xff] %v407
        %409 = vst [vmem:[#allocation2 + $0x170] sm:$0xff] %v406
        %410 = vst [vmem:[#allocation2 + $0x178] sm:$0xff] %v405
        %411 = vrot.lane.b32.xlu0 %v177, 67
        %v412 = vpop.permute.xlu0 %411
        %413 = vrot.lane.b32.xlu0 %v178, 67
        %v414 = vpop.permute.xlu0 %413
        %415 = vrot.lane.b32.xlu0 %v179, 67
        %v416 = vpop.permute.xlu0 %415
        %417 = vrot.lane.b32.xlu0 %v180, 67
        %v418 = vpop.permute.xlu0 %417
        %vm419 = vcmp.lt.s32.totalorder %v193, 67
        %v420 = vsel %vm419, %v416, %v418
        %v421 = vsel %vm419, %v414, %v416
        %v422 = vsel %vm419, %v412, %v414
        %423 = vst [vmem:[#allocation2 + $0x180] sm:$0xff] %v422
        %424 = vst [vmem:[#allocation2 + $0x188] sm:$0xff] %v421
        %425 = vst [vmem:[#allocation2 + $0x190] sm:$0xff] %v420
        %426 = vrot.lane.b32.xlu0 %v177, 66
        %v427 = vpop.permute.xlu0 %426
        %428 = vrot.lane.b32.xlu0 %v178, 66
        %v429 = vpop.permute.xlu0 %428
        %430 = vrot.lane.b32.xlu0 %v179, 66
        %v431 = vpop.permute.xlu0 %430
        %432 = vrot.lane.b32.xlu0 %v180, 66
        %v433 = vpop.permute.xlu0 %432
        %vm434 = vcmp.lt.s32.totalorder %v193, 66
        %v435 = vsel %vm434, %v431, %v433
        %v436 = vsel %vm434, %v429, %v431
        %v437 = vsel %vm434, %v427, %v429
        %438 = vst [vmem:[#allocation2 + $0x198] sm:$0xff] %v437
        %439 = vst [vmem:[#allocation2 + $0x1a0] sm:$0xff] %v436
        %440 = vst [vmem:[#allocation2 + $0x1a8] sm:$0xff] %v435
        %441 = vrot.lane.b32.xlu0 %v177, 65
        %v442 = vpop.permute.xlu0 %441
        %443 = vrot.lane.b32.xlu0 %v178, 65
        %v444 = vpop.permute.xlu0 %443
        %445 = vrot.lane.b32.xlu0 %v179, 65
        %v446 = vpop.permute.xlu0 %445
        %447 = vrot.lane.b32.xlu0 %v180, 65
        %v448 = vpop.permute.xlu0 %447
        %vm449 = vcmp.lt.s32.totalorder %v193, 65
        %v450 = vsel %vm449, %v446, %v448
        %v451 = vsel %vm449, %v444, %v446
        %v452 = vsel %vm449, %v442, %v444
        %453 = vst [vmem:[#allocation2 + $0x1b0] sm:$0xff] %v452
        %454 = vst [vmem:[#allocation2 + $0x1b8] sm:$0xff] %v451
        %455 = vst [vmem:[#allocation2 + $0x1c0] sm:$0xff] %v450
        %456 = vrot.lane.b32.xlu0 %v177, 64
        %v457 = vpop.permute.xlu0 %456
        %458 = vrot.lane.b32.xlu0 %v178, 64
        %v459 = vpop.permute.xlu0 %458
        %460 = vrot.lane.b32.xlu0 %v179, 64
        %v461 = vpop.permute.xlu0 %460
        %462 = vrot.lane.b32.xlu0 %v180, 64
        %v463 = vpop.permute.xlu0 %462
        %vm464 = vcmp.lt.s32.totalorder %v193, 64
        %v465 = vsel %vm464, %v461, %v463
        %v466 = vsel %vm464, %v459, %v461
        %v467 = vsel %vm464, %v457, %v459
        %468 = vst [vmem:[#allocation2 + $0x1c8] sm:$0xff] %v467
        %469 = vst [vmem:[#allocation2 + $0x1d0] sm:$0xff] %v466
        %470 = vst [vmem:[#allocation2 + $0x1d8] sm:$0xff] %v465
        %471 = vrot.lane.b32.xlu0 %v177, 48
        %v472 = vpop.permute.xlu0 %471
        %473 = vrot.lane.b32.xlu0 %v178, 48
        %v474 = vpop.permute.xlu0 %473
        %475 = vrot.lane.b32.xlu0 %v179, 48
        %v476 = vpop.permute.xlu0 %475
        %477 = vrot.lane.b32.xlu0 %v180, 48
        %v478 = vpop.permute.xlu0 %477
        %vm479 = vcmp.lt.s32.totalorder %v193, 48
        %v480 = vsel %vm479, %v476, %v478
        %v481 = vsel %vm479, %v474, %v476
        %v482 = vsel %vm479, %v472, %v474
        %483 = vst [vmem:[#allocation2 + $0x1e0] sm:$0xff] %v482
        %484 = vst [vmem:[#allocation2 + $0x1e8] sm:$0xff] %v481
        %485 = vst [vmem:[#allocation2 + $0x1f0] sm:$0xff] %v480
        %486 = vrot.lane.b32.xlu0 %v177, 47
        %v487 = vpop.permute.xlu0 %486
        %488 = vrot.lane.b32.xlu0 %v178, 47
        %v489 = vpop.permute.xlu0 %488
        %490 = vrot.lane.b32.xlu0 %v179, 47
        %v491 = vpop.permute.xlu0 %490
        %492 = vrot.lane.b32.xlu0 %v180, 47
        %v493 = vpop.permute.xlu0 %492
        %vm494 = vcmp.lt.s32.totalorder %v193, 47
        %v495 = vsel %vm494, %v491, %v493
        %v496 = vsel %vm494, %v489, %v491
        %v497 = vsel %vm494, %v487, %v489
        %498 = vst [vmem:[#allocation2 + $0x1f8] sm:$0xff] %v497
        %499 = vst [vmem:[#allocation2 + $0x200] sm:$0xff] %v496
        %500 = vst [vmem:[#allocation2 + $0x208] sm:$0xff] %v495
        %501 = vrot.lane.b32.xlu0 %v177, 46
        %v502 = vpop.permute.xlu0 %501
        %503 = vrot.lane.b32.xlu0 %v178, 46
        %v504 = vpop.permute.xlu0 %503
        %505 = vrot.lane.b32.xlu0 %v179, 46
        %v506 = vpop.permute.xlu0 %505
        %507 = vrot.lane.b32.xlu0 %v180, 46
        %v508 = vpop.permute.xlu0 %507
        %vm509 = vcmp.lt.s32.totalorder %v193, 46
        %v510 = vsel %vm509, %v506, %v508
        %v511 = vsel %vm509, %v504, %v506
        %v512 = vsel %vm509, %v502, %v504
        %513 = vst [vmem:[#allocation2 + $0x210] sm:$0xff] %v512
        %514 = vst [vmem:[#allocation2 + $0x218] sm:$0xff] %v511
        %515 = vst [vmem:[#allocation2 + $0x220] sm:$0xff] %v510
        %516 = vrot.lane.b32.xlu0 %v177, 45
        %v517 = vpop.permute.xlu0 %516
        %518 = vrot.lane.b32.xlu0 %v178, 45
        %v519 = vpop.permute.xlu0 %518
        %520 = vrot.lane.b32.xlu0 %v179, 45
        %v521 = vpop.permute.xlu0 %520
        %522 = vrot.lane.b32.xlu0 %v180, 45
        %v523 = vpop.permute.xlu0 %522
        %vm524 = vcmp.lt.s32.totalorder %v193, 45
        %v525 = vsel %vm524, %v521, %v523
        %v526 = vsel %vm524, %v519, %v521
        %v527 = vsel %vm524, %v517, %v519
        %528 = vst [vmem:[#allocation2 + $0x228] sm:$0xff] %v527
        %529 = vst [vmem:[#allocation2 + $0x230] sm:$0xff] %v526
        %530 = vst [vmem:[#allocation2 + $0x238] sm:$0xff] %v525
        %531 = vrot.lane.b32.xlu0 %v177, 44
        %v532 = vpop.permute.xlu0 %531
        %533 = vrot.lane.b32.xlu0 %v178, 44
        %v534 = vpop.permute.xlu0 %533
        %535 = vrot.lane.b32.xlu0 %v179, 44
        %v536 = vpop.permute.xlu0 %535
        %537 = vrot.lane.b32.xlu0 %v180, 44
        %v538 = vpop.permute.xlu0 %537
        %vm539 = vcmp.lt.s32.totalorder %v193, 44
        %v540 = vsel %vm539, %v536, %v538
        %v541 = vsel %vm539, %v534, %v536
        %v542 = vsel %vm539, %v532, %v534
        %543 = vst [vmem:[#allocation2 + $0x240] sm:$0xff] %v542
        %544 = vst [vmem:[#allocation2 + $0x248] sm:$0xff] %v541
        %545 = vst [vmem:[#allocation2 + $0x250] sm:$0xff] %v540
        %v546 = vld [vmem:[#allocation6] sm:$0xff]
        %v547 = vld [vmem:[#allocation6 + $0x8] sm:$0xff]
        %v548 = vld [vmem:[#allocation2] sm:$0xff]
        %v549 = vld [vmem:[#allocation2 + $0x8] sm:$0xff]
        %v550 = vld [vmem:[#allocation2 + $0x10] sm:$0xff]
        %v551 = vld [vmem:[#allocation2 + $0x18] sm:$0xff]
        %v552 = vld [vmem:[#allocation2 + $0x20] sm:$0xff]
        %v553 = vld [vmem:[#allocation2 + $0x28] sm:$0xff]
        %v554 = vld [vmem:[#allocation2 + $0x30] sm:$0xff]
        %v555 = vld [vmem:[#allocation2 + $0x38] sm:$0xff]
        %v556 = vld [vmem:[#allocation2 + $0x40] sm:$0xff]
        %v557 = vld [vmem:[#allocation2 + $0x48] sm:$0xff]
        %v558 = vld [vmem:[#allocation2 + $0x50] sm:$0xff]
        %v559 = vld [vmem:[#allocation2 + $0x58] sm:$0xff]
        %v560 = vld [vmem:[#allocation2 + $0x60] sm:$0xff]
        %v561 = vld [vmem:[#allocation2 + $0x68] sm:$0xff]
        %v562 = vld [vmem:[#allocation2 + $0x70] sm:$0xff]
        %v563 = vld [vmem:[#allocation2 + $0x78] sm:$0xff]
        %v564 = vld [vmem:[#allocation2 + $0x80] sm:$0xff]
        %v565 = vld [vmem:[#allocation2 + $0x88] sm:$0xff]
        %v566 = vld [vmem:[#allocation2 + $0x90] sm:$0xff]
        %v567 = vld [vmem:[#allocation2 + $0x98] sm:$0xff]
        %v568 = vld [vmem:[#allocation2 + $0xa0] sm:$0xff]
        %v569 = vld [vmem:[#allocation2 + $0xa8] sm:$0xff]
        %v570 = vld [vmem:[#allocation2 + $0xb0] sm:$0xff]
        %v571 = vld [vmem:[#allocation2 + $0xb8] sm:$0xff]
        %v572 = vld [vmem:[#allocation2 + $0xc0] sm:$0xff]
        %v573 = vld [vmem:[#allocation2 + $0xc8] sm:$0xff]
        %v574 = vld [vmem:[#allocation2 + $0xd0] sm:$0xff]
        %v575 = vld [vmem:[#allocation2 + $0xd8] sm:$0xff]
        %v576 = vld [vmem:[#allocation2 + $0xe0] sm:$0xff]
        %v577 = vld [vmem:[#allocation2 + $0xe8] sm:$0xff]
        %v578 = vld [vmem:[#allocation2 + $0xf0] sm:$0xff]
        %v579 = vld [vmem:[#allocation2 + $0xf8] sm:$0xff]
        %v580 = vld [vmem:[#allocation2 + $0x100] sm:$0xff]
        %v581 = vld [vmem:[#allocation2 + $0x108] sm:$0xff]
        %v582 = vld [vmem:[#allocation2 + $0x110] sm:$0xff]
        %v583 = vld [vmem:[#allocation2 + $0x118] sm:$0xff]
        %v584 = vld [vmem:[#allocation2 + $0x120] sm:$0xff]
        %v585 = vld [vmem:[#allocation2 + $0x128] sm:$0xff]
        %v586 = vld [vmem:[#allocation2 + $0x130] sm:$0xff]
        %v587 = vld [vmem:[#allocation2 + $0x138] sm:$0xff]
        %v588 = vld [vmem:[#allocation2 + $0x140] sm:$0xff]
        %v589 = vld [vmem:[#allocation2 + $0x148] sm:$0xff]
        %v590 = vld [vmem:[#allocation2 + $0x150] sm:$0xff]
        %v591 = vld [vmem:[#allocation2 + $0x158] sm:$0xff]
        %v592 = vld [vmem:[#allocation2 + $0x160] sm:$0xff]
        %v593 = vld [vmem:[#allocation2 + $0x168] sm:$0xff]
        %v594 = vld [vmem:[#allocation2 + $0x170] sm:$0xff]
        %v595 = vld [vmem:[#allocation2 + $0x178] sm:$0xff]
        %v596 = vld [vmem:[#allocation2 + $0x180] sm:$0xff]
        %v597 = vld [vmem:[#allocation2 + $0x188] sm:$0xff]
        %v598 = vld [vmem:[#allocation2 + $0x190] sm:$0xff]
        %v599 = vld [vmem:[#allocation2 + $0x198] sm:$0xff]
        %v600 = vld [vmem:[#allocation2 + $0x1a0] sm:$0xff]
        %v601 = vld [vmem:[#allocation2 + $0x1a8] sm:$0xff]
        %v602 = vld [vmem:[#allocation2 + $0x1b0] sm:$0xff]
        %v603 = vld [vmem:[#allocation2 + $0x1b8] sm:$0xff]
        %v604 = vld [vmem:[#allocation2 + $0x1c0] sm:$0xff]
        %v605 = vld [vmem:[#allocation2 + $0x1c8] sm:$0xff]
        %v606 = vld [vmem:[#allocation2 + $0x1d0] sm:$0xff]
        %v607 = vld [vmem:[#allocation2 + $0x1d8] sm:$0xff]
        %v608 = vld [vmem:[#allocation2 + $0x1e0] sm:$0xff]
        %v609 = vld [vmem:[#allocation2 + $0x1e8] sm:$0xff]
        %v610 = vld [vmem:[#allocation2 + $0x1f0] sm:$0xff]
        %v611 = vld [vmem:[#allocation2 + $0x1f8] sm:$0xff]
        %v612 = vld [vmem:[#allocation2 + $0x200] sm:$0xff]
        %v613 = vld [vmem:[#allocation2 + $0x208] sm:$0xff]
        %v614 = vld [vmem:[#allocation2 + $0x210] sm:$0xff]
        %v615 = vld [vmem:[#allocation2 + $0x218] sm:$0xff]
        %v616 = vld [vmem:[#allocation2 + $0x220] sm:$0xff]
        %v617 = vld [vmem:[#allocation2 + $0x228] sm:$0xff]
        %v618 = vld [vmem:[#allocation2 + $0x230] sm:$0xff]
        %v619 = vld [vmem:[#allocation2 + $0x238] sm:$0xff]
        %v620 = vld [vmem:[#allocation2 + $0x240] sm:$0xff]
        %v621 = vld [vmem:[#allocation2 + $0x248] sm:$0xff]
        %v622 = vld [vmem:[#allocation2 + $0x250] sm:$0xff]
        %vm623 = vcmask 588800
        %v625 = vsel %vm623, %v547, 0
        %627 = vmatpush.msra.mxu0 %v593
        %628 = vmatpush.msra.mxu0 %v590
        %629 = vmatpush.msra.mxu0 %v587
        %630 = vmatpush.msra.mxu0 %v584
        %631 = vmatpush.msra.mxu0 %v581
        %632 = vmatpush.msra.mxu0 %v578
        %633 = vmatpush.msra.mxu0 %v575
        %634 = vmatpush.msra.mxu0 %v572
        %635 = vmatpush.msra.mxu0 %v569
        %636 = vmatpush.msra.mxu0 %v566
        %637 = vmatpush.msra.mxu0 %v563
        %638 = vmatpush.msra.mxu0 %v560
        %639 = vmatpush.msra.mxu0 %v557
        %640 = vmatpush.msra.mxu0 %v554
        %641 = vmatpush.msra.mxu0 %v551
        %642 = vmatpush.msra.mxu0 %v548
        %643 = vmatmul.f32.gmra.mxu0 %v546
        %v644 = vpop.f32.mrf.mxu0
        %v645 = vadd.f32 0.0, %v644
        %646 = vdwg.mxu0
        %647 = vmatpush.msra.mxu0 0.0
        %648 = vmatpush.msra.mxu0 0.0
        %649 = vmatpush.msra.mxu0 0.0
        %650 = vmatpush.msra.mxu0 0.0
        %651 = vmatpush.msra.mxu0 0.0
        %652 = vmatpush.msra.mxu0 0.0
        %653 = vmatpush.msra.mxu0 0.0
        %654 = vmatpush.msra.mxu0 %v620
        %655 = vmatpush.msra.mxu0 %v617
        %656 = vmatpush.msra.mxu0 %v614
        %657 = vmatpush.msra.mxu0 %v611
        %658 = vmatpush.msra.mxu0 %v608
        %659 = vmatpush.msra.mxu0 %v605
        %660 = vmatpush.msra.mxu0 %v602
        %661 = vmatpush.msra.mxu0 %v599
        %662 = vmatpush.msra.mxu0 %v596
        %663 = vmatmul.f32.gmra.mxu0 %v625
        %v664 = vpop.f32.mrf.mxu0
        %v665 = vadd.f32 %v645, %v664
        %666 = vdwg.mxu0
        %667 = vmatpush.msra.mxu0 %v594
        %668 = vmatpush.msra.mxu0 %v591
        %669 = vmatpush.msra.mxu0 %v588
        %670 = vmatpush.msra.mxu0 %v585
        %671 = vmatpush.msra.mxu0 %v582
        %672 = vmatpush.msra.mxu0 %v579
        %673 = vmatpush.msra.mxu0 %v576
        %674 = vmatpush.msra.mxu0 %v573
        %675 = vmatpush.msra.mxu0 %v570
        %676 = vmatpush.msra.mxu0 %v567
        %677 = vmatpush.msra.mxu0 %v564
        %678 = vmatpush.msra.mxu0 %v561
        %679 = vmatpush.msra.mxu0 %v558
        %680 = vmatpush.msra.mxu0 %v555
        %681 = vmatpush.msra.mxu0 %v552
        %682 = vmatpush.msra.mxu0 %v549
        %683 = vmatmul.f32.gmra.mxu0 %v546
        %v684 = vpop.f32.mrf.mxu0
        %v685 = vadd.f32 0.0, %v684
        %686 = vdwg.mxu0
        %687 = vmatpush.msra.mxu0 0.0
        %688 = vmatpush.msra.mxu0 0.0
        %689 = vmatpush.msra.mxu0 0.0
        %690 = vmatpush.msra.mxu0 0.0
        %691 = vmatpush.msra.mxu0 0.0
        %692 = vmatpush.msra.mxu0 0.0
        %693 = vmatpush.msra.mxu0 0.0
        %694 = vmatpush.msra.mxu0 %v621
        %695 = vmatpush.msra.mxu0 %v618
        %696 = vmatpush.msra.mxu0 %v615
        %697 = vmatpush.msra.mxu0 %v612
        %698 = vmatpush.msra.mxu0 %v609
        %699 = vmatpush.msra.mxu0 %v606
        %700 = vmatpush.msra.mxu0 %v603
        %701 = vmatpush.msra.mxu0 %v600
        %702 = vmatpush.msra.mxu0 %v597
        %703 = vmatmul.f32.gmra.mxu0 %v625
        %v704 = vpop.f32.mrf.mxu0
        %v705 = vadd.f32 %v685, %v704
        %706 = vdwg.mxu0
        %707 = vmatpush.msra.mxu0 %v595
        %708 = vmatpush.msra.mxu0 %v592
        %709 = vmatpush.msra.mxu0 %v589
        %710 = vmatpush.msra.mxu0 %v586
        %711 = vmatpush.msra.mxu0 %v583
        %712 = vmatpush.msra.mxu0 %v580
        %713 = vmatpush.msra.mxu0 %v577
        %714 = vmatpush.msra.mxu0 %v574
        %715 = vmatpush.msra.mxu0 %v571
        %716 = vmatpush.msra.mxu0 %v568
        %717 = vmatpush.msra.mxu0 %v565
        %718 = vmatpush.msra.mxu0 %v562
        %719 = vmatpush.msra.mxu0 %v559
        %720 = vmatpush.msra.mxu0 %v556
        %721 = vmatpush.msra.mxu0 %v553
        %722 = vmatpush.msra.mxu0 %v550
        %723 = vmatmul.f32.gmra.mxu0 %v546
        %v724 = vpop.f32.mrf.mxu0
        %v725 = vadd.f32 0.0, %v724
        %726 = vdwg.mxu0
        %727 = vmatpush.msra.mxu0 0.0
        %728 = vmatpush.msra.mxu0 0.0
        %729 = vmatpush.msra.mxu0 0.0
        %730 = vmatpush.msra.mxu0 0.0
        %731 = vmatpush.msra.mxu0 0.0
        %732 = vmatpush.msra.mxu0 0.0
        %733 = vmatpush.msra.mxu0 0.0
        %734 = vmatpush.msra.mxu0 %v622
        %735 = vmatpush.msra.mxu0 %v619
        %736 = vmatpush.msra.mxu0 %v616
        %737 = vmatpush.msra.mxu0 %v613
        %738 = vmatpush.msra.mxu0 %v610
        %739 = vmatpush.msra.mxu0 %v607
        %740 = vmatpush.msra.mxu0 %v604
        %741 = vmatpush.msra.mxu0 %v601
        %742 = vmatpush.msra.mxu0 %v598
        %743 = vmatmul.f32.gmra.mxu0 %v625
        %v744 = vpop.f32.mrf.mxu0
        %v745 = vadd.f32 %v725, %v744
        %746 = vdwg.mxu0
        %747 = vst [vmem:[%s176] sm:$0xff] %v665
        %748 = vst [vmem:[%s176 + $0x8] sm:$0xff] %v705
        %749 = vst [vmem:[%s176 + $0x10] sm:$0xff] %v745
        %s750 = sand.u32 %s75, 1
        %s751 = scalar_lea.sflag [#allocation5], %s750
        %s752 = sand.u32 %s75, 1
        %s753 = smul.addr %s752, 24
        %s754 = scalar_lea.vmem [#allocation8], %s753
        // Predicated region
        $region37: #{tpu_custom_call.1} parent=27 // pred_check
          %p755 = pneg %p85
        $region38: #{tpu_custom_call.1} parent=27 // pred_check_branch
          %757 = sbr.rel (%p755) target = $region40
        $region39: #{tpu_custom_call.1} parent=27 // pred_region
          %759 = vsyncadd %s751, 0
          %s760 = smul.addr %s20, 3
          %s761 = smul.addr %s760, 8
          %s762 = scalar_lea.hbm %s2, %s761
          %s764 = sshll.u32 %s754, 4
          %s765 = int_to_ptr.vmem [resolvable:$true] %s764
          %s766 = sshll.u32 %s762, 4
          %s767 = int_to_ptr.hbm [resolvable:$true] %s766
          %769 = dma.vmem_to_hbm [thread:$0]  %s765, 384, %s767, %s751
        $region40: #{tpu_custom_call.1} parent=27 // pred_fallthru
          _
      $region28: #{tpu_custom_call.1} parent=5 // pred_fallthru
        _
      %p770 = scmp.le.s32.totalorder 2, %s15
      // Predicated region
      $region41: #{tpu_custom_call.1} parent=5 // pred_check
        %p771 = pneg %p770
      $region42: #{tpu_custom_call.1} parent=5 // pred_check_branch
        %773 = sbr.rel (%p771) target = $region44
      $region43: #{tpu_custom_call.1} parent=5 // pred_region
        %s774 = ssub.s32 %s15, 2
        // Predicated region
        $region45: #{tpu_custom_call.1} parent=43 // pred_check
          %p775 = pneg %p91
        $region46: #{tpu_custom_call.1} parent=43 // pred_check_branch
          %777 = sbr.rel (%p775) target = $region48
        $region47: #{tpu_custom_call.1} parent=43 // pred_region
          %s778 = sand.u32 %s76, 1
          %s779 = scalar_lea.sflag [#allocation5], %s778
          %s780 = sand.u32 %s76, 1
          %s781 = smul.addr %s780, 24
          %s782 = scalar_lea.vmem [#allocation8], %s781
          %784 = dma.done %s779, 384
        $region48: #{tpu_custom_call.1} parent=43 // pred_fallthru
          _
      $region44: #{tpu_custom_call.1} parent=5 // pred_fallthru
        _
    $region6: #{tpu_custom_call.1} parent=1 // loop_footer
      %s19 = sadd.s32 1, %s15
    $region7: #{tpu_custom_call.1} parent=1 // loop_footer_branch
      %14 = sbr.rel target = $region3
    $region8: #{tpu_custom_call.1} parent=1 // loop_exit
      _
    %785 = vsyncpa [#allocation4], 1
    %s786 = scalar_lea.sflag [#allocation4], 1
    %787 = vsyncpa %s786, 1
    %788 = vsyncpa [#allocation7], 1
    %789 = vsyncpa [#allocation5], 1
    %s790 = scalar_lea.sflag [#allocation5], 1
    %791 = vsyncpa %s790, 1

</llo_original>
